<compile_context>
chip_gen: v7x
topology: tpu7x:2x2x1
jax: 0.10.0
libtpu: 0.0.40
codegen_flags: <defaults>
</compile_context>

<pallas_src>
import functools

import jax
import jax.numpy as jnp
from jax.experimental import pallas as pl
from jax.experimental.pallas import tpu as pltpu


_LANE = 128          # pad narrow feature dims (64 / action_space) up to full lane width
_SUBLANE_BF16 = 16   # bf16 sublane packing: batch tiles are multiples of this


def _round_up(x, m):
    return (x + m - 1) // m * m


def _mlp_kernel(x_ref,
                w1_ref, b1_ref,
                w2_ref, b2_ref,
                w3_ref, b3_ref,
                w4_ref, b4_ref,
                o_ref):
    """Whole 4-layer MLP fused in one kernel.

    Matmul operands are bf16 (MXU); accumulation, bias-add and ReLU are f32.
    """
    h = x_ref[...]                                                            # bf16 (tile, 128)
    h = jnp.dot(h, w1_ref[...], preferred_element_type=jnp.float32) + b1_ref[...]
    h = jnp.maximum(h, 0.0).astype(jnp.bfloat16)
    h = jnp.dot(h, w2_ref[...], preferred_element_type=jnp.float32) + b2_ref[...]
    h = jnp.maximum(h, 0.0).astype(jnp.bfloat16)
    h = jnp.dot(h, w3_ref[...], preferred_element_type=jnp.float32) + b3_ref[...]
    h = jnp.maximum(h, 0.0).astype(jnp.bfloat16)
    h = jnp.dot(h, w4_ref[...], preferred_element_type=jnp.float32) + b4_ref[...]
    o_ref[...] = h.astype(o_ref.dtype)                                        # lane-dense (tile, 128)


@functools.partial(jax.jit, static_argnames=("batch_tile",))
def dqn_linear_forward(x, params, *, batch_tile=512):
    """DQNLinear forward via Pallas.

    x:      (B, inputsize) float32
    params: dict w1,b1,...,w4,b4; weights (in, out), biases (1, out), float32.
    """
    B, F = x.shape
    A = params["w4"].shape[1]

    # ---- pad + cast parameters (zero padding keeps the sliced result exact) ----
    h3 = params["w3"].shape[1]
    h3p = _round_up(h3, _LANE)          # 64 -> 128: full-width MXU pass for layers 3/4
    ap = _round_up(A, _LANE)            # 4  -> 128: unmasked, lane-dense output store

    w1 = params["w1"].astype(jnp.bfloat16)
    w2 = params["w2"].astype(jnp.bfloat16)
    w3 = jnp.pad(params["w3"], ((0, 0), (0, h3p - h3))).astype(jnp.bfloat16)
    w4 = jnp.pad(params["w4"], ((0, h3p - h3), (0, ap - A))).astype(jnp.bfloat16)
    b1 = params["b1"].astype(jnp.float32)
    b2 = params["b2"].astype(jnp.float32)
    b3 = jnp.pad(params["b3"], ((0, 0), (0, h3p - h3))).astype(jnp.float32)
    b4 = jnp.pad(params["b4"], ((0, 0), (0, ap - A))).astype(jnp.float32)

    # ---- batch tiling: big tiles, padded batch; tiny batches collapse to grid=(1,) ----
    tile = min(batch_tile, _round_up(B, _SUBLANE_BF16))
    tile = max(_SUBLANE_BF16, _round_up(tile, _SUBLANE_BF16))
    Bp = _round_up(B, tile)
    grid = (Bp // tile,)

    xp = x
    if Bp != B:
        xp = jnp.pad(x, ((0, Bp - B), (0, 0)))
    xp = xp.astype(jnp.bfloat16)

    rep = lambda i: (0, 0)   # weights/biases: same (only) block every grid step -> stay resident

    in_specs = [
        pl.BlockSpec((tile, F), lambda i: (i, 0)),   # x tile over batch
        pl.BlockSpec(w1.shape, rep), pl.BlockSpec(b1.shape, rep),
        pl.BlockSpec(w2.shape, rep), pl.BlockSpec(b2.shape, rep),
        pl.BlockSpec(w3.shape, rep), pl.BlockSpec(b3.shape, rep),
        pl.BlockSpec(w4.shape, rep), pl.BlockSpec(b4.shape, rep),
    ]
    out_specs = pl.BlockSpec((tile, ap), lambda i: (i, 0))

    flops = 2 * Bp * (F * w1.shape[1]
                      + w2.shape[0] * w2.shape[1]
                      + w3.shape[0] * h3p
                      + h3p * ap)
    bytes_accessed = (
        xp.size * 2
        + (w1.size + w2.size + w3.size + w4.size) * 2
        + (b1.size + b2.size + b3.size + b4.size) * 4
        + Bp * ap * 4)

    out = pl.pallas_call(
        _mlp_kernel,
        out_shape=jax.ShapeDtypeStruct((Bp, ap), jnp.float32),
        grid=grid,
        in_specs=in_specs,
        out_specs=out_specs,
        compiler_params=pltpu.CompilerParams(
            dimension_semantics=("parallel",)),
        cost_estimate=pl.CostEstimate(
            flops=flops, transcendentals=0, bytes_accessed=bytes_accessed),
    )(xp, w1, b1, w2, b2, w3, b3, w4, b4)

    return out[:B, :A]


def init_params(key, inputsize=128, action_space=4):
    """Deterministic synthetic parameters with the same shapes as DQNLinear."""
    dims = [(inputsize, 256), (256, 128), (128, 64), (64, action_space)]
    params = {}
    for idx, (din, dout) in enumerate(dims, start=1):
        key, kw, kb = jax.random.split(key, 3)
        scale = 1.0 / jnp.sqrt(jnp.float32(din))  # ~ PyTorch Linear init scale
        params[f"w{idx}"] = jax.random.uniform(
            kw, (din, dout), jnp.float32, minval=-scale, maxval=scale)
        params[f"b{idx}"] = jax.random.uniform(
            kb, (1, dout), jnp.float32, minval=-scale, maxval=scale)
    return params


def reference_forward_f32(x, params):
    """Plain-JAX f32 reference mirroring nn.Sequential(Linear, ReLU, ...)."""
    h = jnp.maximum(x @ params["w1"] + params["b1"], 0.0)
    h = jnp.maximum(h @ params["w2"] + params["b2"], 0.0)
    h = jnp.maximum(h @ params["w3"] + params["b3"], 0.0)
    return h @ params["w4"] + params["b4"]


def reference_forward_bf16(x, params):
    """Reference with the same numerics as the kernel: bf16 matmuls, f32 accumulation."""
    def lin(h, w, b):
        return jnp.dot(h.astype(jnp.bfloat16), w.astype(jnp.bfloat16),
                       preferred_element_type=jnp.float32) + b
    h = jnp.maximum(lin(x, params["w1"], params["b1"]), 0.0)
    h = jnp.maximum(lin(h, params["w2"], params["b2"]), 0.0)
    h = jnp.maximum(lin(h, params["w3"], params["b3"]), 0.0)
    return lin(h, params["w4"], params["b4"])


if __name__ == "__main__":
    key = jax.random.PRNGKey(0)
    key, kx = jax.random.split(key)

    inputsize = 128
    action_space = 4
    batch = 64

    params = init_params(key, inputsize=inputsize, action_space=action_space)
    x = jax.random.normal(kx, (batch, inputsize), jnp.float32)

    # batch_tile=32 -> grid=(2,): exercises the batch pipeline / megacore sharding.
    out = dqn_linear_forward(x, params, batch_tile=32)
    out = jax.block_until_ready(out)

    ref_match = reference_forward_bf16(x, params)   # same numerics as the kernel
    ref_f32 = reference_forward_f32(x, params)

    assert out.shape == (batch, action_space)
    assert jnp.allclose(out, ref_match, atol=2e-3, rtol=2e-3), "mismatch vs bf16 reference"
    assert jnp.allclose(out, ref_f32, atol=5e-2, rtol=5e-2), "mismatch vs f32 reference"

    print("KERNEL_OK")
</pallas_src>

<mosaic_0001>
module attributes {stable_mosaic.version = 11 : i64} {
  func.func @_mlp_kernel(%arg0: i32, %arg1: memref<32x128xbf16, #tpu.memory_space<vmem>>, %arg2: memref<128x256xbf16, #tpu.memory_space<vmem>>, %arg3: memref<1x256xf32, #tpu.memory_space<vmem>>, %arg4: memref<256x128xbf16, #tpu.memory_space<vmem>>, %arg5: memref<1x128xf32, #tpu.memory_space<vmem>>, %arg6: memref<128x128xbf16, #tpu.memory_space<vmem>>, %arg7: memref<1x128xf32, #tpu.memory_space<vmem>>, %arg8: memref<128x128xbf16, #tpu.memory_space<vmem>>, %arg9: memref<1x128xf32, #tpu.memory_space<vmem>>, %arg10: memref<32x128xf32, #tpu.memory_space<vmem>>) attributes {dimension_semantics = [#tpu.dimension_semantics<parallel>], iteration_bounds = array<i64: 2>, scalar_prefetch = 0 : i64, scratch_operands = 0 : i64, tpu.core_type = #tpu.core_type<tc>, window_params = [{transform_indices = @transform_0, window_bounds = array<i64: 32, 128>}, {pipeline_mode = #tpu.pipeline_mode<synchronous>, transform_indices = @transform_1, window_bounds = array<i64: 128, 256>}, {pipeline_mode = #tpu.pipeline_mode<synchronous>, transform_indices = @transform_2, window_bounds = array<i64: 1, 256>}, {pipeline_mode = #tpu.pipeline_mode<synchronous>, transform_indices = @transform_3, window_bounds = array<i64: 256, 128>}, {pipeline_mode = #tpu.pipeline_mode<synchronous>, transform_indices = @transform_4, window_bounds = array<i64: 1, 128>}, {pipeline_mode = #tpu.pipeline_mode<synchronous>, transform_indices = @transform_5, window_bounds = array<i64: 128, 128>}, {pipeline_mode = #tpu.pipeline_mode<synchronous>, transform_indices = @transform_6, window_bounds = array<i64: 1, 128>}, {pipeline_mode = #tpu.pipeline_mode<synchronous>, transform_indices = @transform_7, window_bounds = array<i64: 128, 128>}, {pipeline_mode = #tpu.pipeline_mode<synchronous>, transform_indices = @transform_8, window_bounds = array<i64: 1, 128>}, {transform_indices = @transform_9, window_bounds = array<i64: 32, 128>}]} {
    %c0 = arith.constant 0 : index
    %c0_0 = arith.constant 0 : index
    %0 = vector.load %arg1[%c0, %c0_0] : memref<32x128xbf16, #tpu.memory_space<vmem>>, vector<32x128xbf16>
    %c0_1 = arith.constant 0 : index
    %c0_2 = arith.constant 0 : index
    %1 = vector.load %arg2[%c0_1, %c0_2] : memref<128x256xbf16, #tpu.memory_space<vmem>>, vector<128x256xbf16>
    %cst = arith.constant dense<0.000000e+00> : vector<32x256xf32>
    %2 = tpu.matmul %0, %1, %cst {dimension_numbers = #tpu.dot_dimension_numbers<[1], [0], [0], [1], [0, 0, 1, 1], [], []>} : vector<32x128xbf16>, vector<128x256xbf16>, vector<32x256xf32> -> vector<32x256xf32>
    %c0_3 = arith.constant 0 : index
    %c0_4 = arith.constant 0 : index
    %3 = vector.load %arg3[%c0_3, %c0_4] : memref<1x256xf32, #tpu.memory_space<vmem>>, vector<1x256xf32>
    %4 = vector.broadcast %3 : vector<1x256xf32> to vector<32x256xf32>
    %5 = arith.addf %2, %4 : vector<32x256xf32>
    %cst_5 = arith.constant 0.000000e+00 : f32
    %6 = vector.broadcast %cst_5 : f32 to vector<32x256xf32>
    %7 = arith.maximumf %5, %6 : vector<32x256xf32>
    %8 = arith.truncf %7 : vector<32x256xf32> to vector<32x256xbf16>
    %c0_6 = arith.constant 0 : index
    %c0_7 = arith.constant 0 : index
    %9 = vector.load %arg4[%c0_6, %c0_7] : memref<256x128xbf16, #tpu.memory_space<vmem>>, vector<256x128xbf16>
    %cst_8 = arith.constant dense<0.000000e+00> : vector<32x128xf32>
    %10 = tpu.matmul %8, %9, %cst_8 {dimension_numbers = #tpu.dot_dimension_numbers<[1], [0], [0], [1], [0, 0, 1, 1], [], []>} : vector<32x256xbf16>, vector<256x128xbf16>, vector<32x128xf32> -> vector<32x128xf32>
    %c0_9 = arith.constant 0 : index
    %c0_10 = arith.constant 0 : index
    %11 = vector.load %arg5[%c0_9, %c0_10] : memref<1x128xf32, #tpu.memory_space<vmem>>, vector<1x128xf32>
    %12 = vector.broadcast %11 : vector<1x128xf32> to vector<32x128xf32>
    %13 = arith.addf %10, %12 : vector<32x128xf32>
    %cst_11 = arith.constant 0.000000e+00 : f32
    %14 = vector.broadcast %cst_11 : f32 to vector<32x128xf32>
    %15 = arith.maximumf %13, %14 : vector<32x128xf32>
    %16 = arith.truncf %15 : vector<32x128xf32> to vector<32x128xbf16>
    %c0_12 = arith.constant 0 : index
    %c0_13 = arith.constant 0 : index
    %17 = vector.load %arg6[%c0_12, %c0_13] : memref<128x128xbf16, #tpu.memory_space<vmem>>, vector<128x128xbf16>
    %cst_14 = arith.constant dense<0.000000e+00> : vector<32x128xf32>
    %18 = tpu.matmul %16, %17, %cst_14 {dimension_numbers = #tpu.dot_dimension_numbers<[1], [0], [0], [1], [0, 0, 1, 1], [], []>} : vector<32x128xbf16>, vector<128x128xbf16>, vector<32x128xf32> -> vector<32x128xf32>
    %c0_15 = arith.constant 0 : index
    %c0_16 = arith.constant 0 : index
    %19 = vector.load %arg7[%c0_15, %c0_16] : memref<1x128xf32, #tpu.memory_space<vmem>>, vector<1x128xf32>
    %20 = vector.broadcast %19 : vector<1x128xf32> to vector<32x128xf32>
    %21 = arith.addf %18, %20 : vector<32x128xf32>
    %cst_17 = arith.constant 0.000000e+00 : f32
    %22 = vector.broadcast %cst_17 : f32 to vector<32x128xf32>
    %23 = arith.maximumf %21, %22 : vector<32x128xf32>
    %24 = arith.truncf %23 : vector<32x128xf32> to vector<32x128xbf16>
    %c0_18 = arith.constant 0 : index
    %c0_19 = arith.constant 0 : index
    %25 = vector.load %arg8[%c0_18, %c0_19] : memref<128x128xbf16, #tpu.memory_space<vmem>>, vector<128x128xbf16>
    %cst_20 = arith.constant dense<0.000000e+00> : vector<32x128xf32>
    %26 = tpu.matmul %24, %25, %cst_20 {dimension_numbers = #tpu.dot_dimension_numbers<[1], [0], [0], [1], [0, 0, 1, 1], [], []>} : vector<32x128xbf16>, vector<128x128xbf16>, vector<32x128xf32> -> vector<32x128xf32>
    %c0_21 = arith.constant 0 : index
    %c0_22 = arith.constant 0 : index
    %27 = vector.load %arg9[%c0_21, %c0_22] : memref<1x128xf32, #tpu.memory_space<vmem>>, vector<1x128xf32>
    %28 = vector.broadcast %27 : vector<1x128xf32> to vector<32x128xf32>
    %29 = arith.addf %26, %28 : vector<32x128xf32>
    %c0_23 = arith.constant 0 : index
    %c0_24 = arith.constant 0 : index
    %30 = vector.load %arg10[%c0_23, %c0_24] : memref<32x128xf32, #tpu.memory_space<vmem>>, vector<32x128xf32>
    tpu.vector_store %arg10[%c0_23, %c0_24], %29 {strides = array<i32>} : memref<32x128xf32, #tpu.memory_space<vmem>>, vector<32x128xf32>,
    return
  }
  func.func @transform_0(%arg0: i32) -> (i32, i32) {
    %c0_i32 = arith.constant 0 : i32
    %c0_i32_0 = arith.constant 0 : i32
    return %arg0, %c0_i32 : i32, i32
  }
  func.func @transform_1(%arg0: i32) -> (i32, i32) {
    %c0_i32 = arith.constant 0 : i32
    %c0_i32_0 = arith.constant 0 : i32
    %c0_i32_1 = arith.constant 0 : i32
    return %c0_i32, %c0_i32_0 : i32, i32
  }
  func.func @transform_2(%arg0: i32) -> (i32, i32) {
    %c0_i32 = arith.constant 0 : i32
    %c0_i32_0 = arith.constant 0 : i32
    %c0_i32_1 = arith.constant 0 : i32
    return %c0_i32, %c0_i32_0 : i32, i32
  }
  func.func @transform_3(%arg0: i32) -> (i32, i32) {
    %c0_i32 = arith.constant 0 : i32
    %c0_i32_0 = arith.constant 0 : i32
    %c0_i32_1 = arith.constant 0 : i32
    return %c0_i32, %c0_i32_0 : i32, i32
  }
  func.func @transform_4(%arg0: i32) -> (i32, i32) {
    %c0_i32 = arith.constant 0 : i32
    %c0_i32_0 = arith.constant 0 : i32
    %c0_i32_1 = arith.constant 0 : i32
    return %c0_i32, %c0_i32_0 : i32, i32
  }
  func.func @transform_5(%arg0: i32) -> (i32, i32) {
    %c0_i32 = arith.constant 0 : i32
    %c0_i32_0 = arith.constant 0 : i32
    %c0_i32_1 = arith.constant 0 : i32
    return %c0_i32, %c0_i32_0 : i32, i32
  }
  func.func @transform_6(%arg0: i32) -> (i32, i32) {
    %c0_i32 = arith.constant 0 : i32
    %c0_i32_0 = arith.constant 0 : i32
    %c0_i32_1 = arith.constant 0 : i32
    return %c0_i32, %c0_i32_0 : i32, i32
  }
  func.func @transform_7(%arg0: i32) -> (i32, i32) {
    %c0_i32 = arith.constant 0 : i32
    %c0_i32_0 = arith.constant 0 : i32
    %c0_i32_1 = arith.constant 0 : i32
    return %c0_i32, %c0_i32_0 : i32, i32
  }
  func.func @transform_8(%arg0: i32) -> (i32, i32) {
    %c0_i32 = arith.constant 0 : i32
    %c0_i32_0 = arith.constant 0 : i32
    %c0_i32_1 = arith.constant 0 : i32
    return %c0_i32, %c0_i32_0 : i32, i32
  }
  func.func @transform_9(%arg0: i32) -> (i32, i32) {
    %c0_i32 = arith.constant 0 : i32
    %c0_i32_0 = arith.constant 0 : i32
    return %arg0, %c0_i32 : i32, i32
  }
}

</mosaic_0001>

<llo_original>
// kernel: dqn_linear_forward.1
$region0: #{dqn_linear_forward.1}
  #allocation0 [shape = 'u32[]', space=smem, size = 0x4, offset = 0x4, fixed_abs, tag = 'smem constant byte address 0x4 - core index']
  #allocation1 [shape = 'u32[144,128]{1,0:T(1,128)}', space=vmem, size = 0x12000, scoped, tag = 'internal scratch']
  %s0 = inlined_call_operand.vmem [shape: bf16[64,128], index: 0, kind: input, shape index: {}]
  %s1 = inlined_call_operand.vmem [shape: bf16[128,256], index: 1, kind: input, shape index: {}]
  %s2 = inlined_call_operand.vmem [shape: f32[1,256], index: 2, kind: input, shape index: {}]
  %s3 = inlined_call_operand.vmem [shape: bf16[256,128], index: 3, kind: input, shape index: {}]
  %s4 = inlined_call_operand.vmem [shape: f32[1,128], index: 4, kind: input, shape index: {}]
  %s5 = inlined_call_operand.vmem [shape: bf16[128,128], index: 5, kind: input, shape index: {}]
  %s6 = inlined_call_operand.vmem [shape: f32[1,128], index: 6, kind: input, shape index: {}]
  %s7 = inlined_call_operand.vmem [shape: bf16[128,128], index: 7, kind: input, shape index: {}]
  %s8 = inlined_call_operand.vmem [shape: f32[1,128], index: 8, kind: input, shape index: {}]
  %s9 = inlined_call_operand.vmem [shape: f32[64,128], index: 9, kind: output, shape index: {}]
  %s10 = sld [smem:[#allocation0]]
  $region69: #{dqn_linear_forward.1} parent=0
    _
  %s12 = ssub.s32 1, %s10
  %s13 = scalar_select 0, %s12, %s10
  loop: start=0, step=1, limit=4
  $region2: #{dqn_linear_forward.1} parent=0 // loop_pre_header
    _
  $region3: #{dqn_linear_forward.1} parent=0 // loop_header
    %s15 = sphi 0, %s19
    %p16 = scmp.ge.s32.totalorder %s15, 4
    %s25 = sphi 0, %s27
    %s28 = sphi 0, %s25
    %s29 = sphi 0, %s28
    %s45 = sphi 0, %s29
    %s49 = sphi 0, %s49
    %s51 = sphi 0, %s49
    %s52 = sphi 0, %s51
    %s66 = sphi 0, %s52
    %s70 = sphi 0, %s70
    %s72 = sphi 0, %s70
    %s73 = sphi 0, %s72
    %s87 = sphi 0, %s73
    %s91 = sphi 0, %s91
    %s93 = sphi 0, %s91
    %s94 = sphi 0, %s93
    %s108 = sphi 0, %s94
    %s112 = sphi 0, %s112
    %s114 = sphi 0, %s112
    %s115 = sphi 0, %s114
    %s129 = sphi 0, %s115
    %s133 = sphi 0, %s133
    %s135 = sphi 0, %s133
    %s136 = sphi 0, %s135
    %s150 = sphi 0, %s136
    %s154 = sphi 0, %s154
    %s156 = sphi 0, %s154
    %s157 = sphi 0, %s156
    %s171 = sphi 0, %s157
    %s175 = sphi 0, %s175
    %s177 = sphi 0, %s175
    %s178 = sphi 0, %s177
    %s192 = sphi 0, %s178
    %s196 = sphi 0, %s196
    %s198 = sphi 0, %s196
    %s199 = sphi 0, %s198
    %s213 = sphi 0, %s199
    %s219 = sphi 0, %s221
    %s222 = sphi 0, %s219
    %s223 = sphi 0, %s222
    %s239 = sphi 0, %s223
  $region4: #{dqn_linear_forward.1} parent=0 // loop_header_branch
    %18 = sbr.rel (%p16) target = $region8
  $region5: #{dqn_linear_forward.1} parent=0 // loop_body
    %s20 = ssub.s32 %s15, 1
    %s21 = ssub.s32 %s15, 2
    %s22 = sadd.s32 %s15, 1
    %s23 = ssub.s32 %s15, %s22
    %p24 = scmp.eq.s32.totalorder %s23, 0
    %s26 = sadd.s32 %s25, 1
    %s27 = scalar_select %p24, %s25, %s26
    %p30 = pneg %p24
    %p31 = scmp.eq.s32.totalorder %s15, 1
    %p32 = por %p30, %p31
    %p33 = scmp.ne.s32.totalorder %s25, %s28
    %p34 = scmp.eq.s32.totalorder %s15, 0
    %p35 = por %p33, %p34
    %p36 = scmp.ne.s32.totalorder %s25, %s28
    %p37 = scmp.eq.s32.totalorder %s20, 1
    %p38 = por %p36, %p37
    %p39 = scmp.ne.s32.totalorder %s28, %s29
    %p40 = scmp.eq.s32.totalorder %s20, 0
    %p41 = por %p39, %p40
    %p42 = scmp.ne.s32.totalorder %s28, %s29
    %p43 = scmp.eq.s32.totalorder %s21, 1
    %p44 = por %p42, %p43
    %p46 = scmp.ne.s32.totalorder %s29, %s45
    %p47 = scmp.eq.s32.totalorder %s21, 0
    %p48 = por %p46, %p47
    %s50 = sadd.s32 %s49, 1
    %p53 = scmp.eq.s32.totalorder %s15, 1
    %p54 = scmp.ne.s32.totalorder %s49, %s51
    %p55 = scmp.eq.s32.totalorder %s15, 0
    %p56 = por %p54, %p55
    %p57 = scmp.ne.s32.totalorder %s49, %s51
    %p58 = scmp.eq.s32.totalorder %s20, 1
    %p59 = por %p57, %p58
    %p60 = scmp.ne.s32.totalorder %s51, %s52
    %p61 = scmp.eq.s32.totalorder %s20, 0
    %p62 = por %p60, %p61
    %p63 = scmp.ne.s32.totalorder %s51, %s52
    %p64 = scmp.eq.s32.totalorder %s21, 1
    %p65 = por %p63, %p64
    %p67 = scmp.ne.s32.totalorder %s52, %s66
    %p68 = scmp.eq.s32.totalorder %s21, 0
    %p69 = por %p67, %p68
    %s71 = sadd.s32 %s70, 1
    %p74 = scmp.eq.s32.totalorder %s15, 1
    %p75 = scmp.ne.s32.totalorder %s70, %s72
    %p76 = scmp.eq.s32.totalorder %s15, 0
    %p77 = por %p75, %p76
    %p78 = scmp.ne.s32.totalorder %s70, %s72
    %p79 = scmp.eq.s32.totalorder %s20, 1
    %p80 = por %p78, %p79
    %p81 = scmp.ne.s32.totalorder %s72, %s73
    %p82 = scmp.eq.s32.totalorder %s20, 0
    %p83 = por %p81, %p82
    %p84 = scmp.ne.s32.totalorder %s72, %s73
    %p85 = scmp.eq.s32.totalorder %s21, 1
    %p86 = por %p84, %p85
    %p88 = scmp.ne.s32.totalorder %s73, %s87
    %p89 = scmp.eq.s32.totalorder %s21, 0
    %p90 = por %p88, %p89
    %s92 = sadd.s32 %s91, 1
    %p95 = scmp.eq.s32.totalorder %s15, 1
    %p96 = scmp.ne.s32.totalorder %s91, %s93
    %p97 = scmp.eq.s32.totalorder %s15, 0
    %p98 = por %p96, %p97
    %p99 = scmp.ne.s32.totalorder %s91, %s93
    %p100 = scmp.eq.s32.totalorder %s20, 1
    %p101 = por %p99, %p100
    %p102 = scmp.ne.s32.totalorder %s93, %s94
    %p103 = scmp.eq.s32.totalorder %s20, 0
    %p104 = por %p102, %p103
    %p105 = scmp.ne.s32.totalorder %s93, %s94
    %p106 = scmp.eq.s32.totalorder %s21, 1
    %p107 = por %p105, %p106
    %p109 = scmp.ne.s32.totalorder %s94, %s108
    %p110 = scmp.eq.s32.totalorder %s21, 0
    %p111 = por %p109, %p110
    %s113 = sadd.s32 %s112, 1
    %p116 = scmp.eq.s32.totalorder %s15, 1
    %p117 = scmp.ne.s32.totalorder %s112, %s114
    %p118 = scmp.eq.s32.totalorder %s15, 0
    %p119 = por %p117, %p118
    %p120 = scmp.ne.s32.totalorder %s112, %s114
    %p121 = scmp.eq.s32.totalorder %s20, 1
    %p122 = por %p120, %p121
    %p123 = scmp.ne.s32.totalorder %s114, %s115
    %p124 = scmp.eq.s32.totalorder %s20, 0
    %p125 = por %p123, %p124
    %p126 = scmp.ne.s32.totalorder %s114, %s115
    %p127 = scmp.eq.s32.totalorder %s21, 1
    %p128 = por %p126, %p127
    %p130 = scmp.ne.s32.totalorder %s115, %s129
    %p131 = scmp.eq.s32.totalorder %s21, 0
    %p132 = por %p130, %p131
    %s134 = sadd.s32 %s133, 1
    %p137 = scmp.eq.s32.totalorder %s15, 1
    %p138 = scmp.ne.s32.totalorder %s133, %s135
    %p139 = scmp.eq.s32.totalorder %s15, 0
    %p140 = por %p138, %p139
    %p141 = scmp.ne.s32.totalorder %s133, %s135
    %p142 = scmp.eq.s32.totalorder %s20, 1
    %p143 = por %p141, %p142
    %p144 = scmp.ne.s32.totalorder %s135, %s136
    %p145 = scmp.eq.s32.totalorder %s20, 0
    %p146 = por %p144, %p145
    %p147 = scmp.ne.s32.totalorder %s135, %s136
    %p148 = scmp.eq.s32.totalorder %s21, 1
    %p149 = por %p147, %p148
    %p151 = scmp.ne.s32.totalorder %s136, %s150
    %p152 = scmp.eq.s32.totalorder %s21, 0
    %p153 = por %p151, %p152
    %s155 = sadd.s32 %s154, 1
    %p158 = scmp.eq.s32.totalorder %s15, 1
    %p159 = scmp.ne.s32.totalorder %s154, %s156
    %p160 = scmp.eq.s32.totalorder %s15, 0
    %p161 = por %p159, %p160
    %p162 = scmp.ne.s32.totalorder %s154, %s156
    %p163 = scmp.eq.s32.totalorder %s20, 1
    %p164 = por %p162, %p163
    %p165 = scmp.ne.s32.totalorder %s156, %s157
    %p166 = scmp.eq.s32.totalorder %s20, 0
    %p167 = por %p165, %p166
    %p168 = scmp.ne.s32.totalorder %s156, %s157
    %p169 = scmp.eq.s32.totalorder %s21, 1
    %p170 = por %p168, %p169
    %p172 = scmp.ne.s32.totalorder %s157, %s171
    %p173 = scmp.eq.s32.totalorder %s21, 0
    %p174 = por %p172, %p173
    %s176 = sadd.s32 %s175, 1
    %p179 = scmp.eq.s32.totalorder %s15, 1
    %p180 = scmp.ne.s32.totalorder %s175, %s177
    %p181 = scmp.eq.s32.totalorder %s15, 0
    %p182 = por %p180, %p181
    %p183 = scmp.ne.s32.totalorder %s175, %s177
    %p184 = scmp.eq.s32.totalorder %s20, 1
    %p185 = por %p183, %p184
    %p186 = scmp.ne.s32.totalorder %s177, %s178
    %p187 = scmp.eq.s32.totalorder %s20, 0
    %p188 = por %p186, %p187
    %p189 = scmp.ne.s32.totalorder %s177, %s178
    %p190 = scmp.eq.s32.totalorder %s21, 1
    %p191 = por %p189, %p190
    %p193 = scmp.ne.s32.totalorder %s178, %s192
    %p194 = scmp.eq.s32.totalorder %s21, 0
    %p195 = por %p193, %p194
    %s197 = sadd.s32 %s196, 1
    %p200 = scmp.eq.s32.totalorder %s15, 1
    %p201 = scmp.ne.s32.totalorder %s196, %s198
    %p202 = scmp.eq.s32.totalorder %s15, 0
    %p203 = por %p201, %p202
    %p204 = scmp.ne.s32.totalorder %s196, %s198
    %p205 = scmp.eq.s32.totalorder %s20, 1
    %p206 = por %p204, %p205
    %p207 = scmp.ne.s32.totalorder %s198, %s199
    %p208 = scmp.eq.s32.totalorder %s20, 0
    %p209 = por %p207, %p208
    %p210 = scmp.ne.s32.totalorder %s198, %s199
    %p211 = scmp.eq.s32.totalorder %s21, 1
    %p212 = por %p210, %p211
    %p214 = scmp.ne.s32.totalorder %s199, %s213
    %p215 = scmp.eq.s32.totalorder %s21, 0
    %p216 = por %p214, %p215
    %s217 = ssub.s32 %s15, %s22
    %p218 = scmp.eq.s32.totalorder %s217, 0
    %s220 = sadd.s32 %s219, 1
    %s221 = scalar_select %p218, %s219, %s220
    %p224 = pneg %p218
    %p225 = scmp.eq.s32.totalorder %s15, 1
    %p226 = por %p224, %p225
    %p227 = scmp.ne.s32.totalorder %s219, %s222
    %p228 = scmp.eq.s32.totalorder %s15, 0
    %p229 = por %p227, %p228
    %p230 = scmp.ne.s32.totalorder %s219, %s222
    %p231 = scmp.eq.s32.totalorder %s20, 1
    %p232 = por %p230, %p231
    %p233 = scmp.ne.s32.totalorder %s222, %s223
    %p234 = scmp.eq.s32.totalorder %s20, 0
    %p235 = por %p233, %p234
    %p236 = scmp.ne.s32.totalorder %s222, %s223
    %p237 = scmp.eq.s32.totalorder %s21, 1
    %p238 = por %p236, %p237
    %p240 = scmp.ne.s32.totalorder %s223, %s239
    %p241 = scmp.eq.s32.totalorder %s21, 0
    %p242 = por %p240, %p241
    %p243 = scmp.le.s32.totalorder 1, %s15
    %p244 = scmp.lt.s32.totalorder %s15, 3
    %p245 = pnand %p243, %p244
    %p246 = pneg %p245
    // Predicated region
    $region9: #{dqn_linear_forward.1} parent=5 // pred_check
      _
    $region10: #{dqn_linear_forward.1} parent=5 // pred_check_branch
      %248 = sbr.rel (%p245) target = $region12
    $region11: #{dqn_linear_forward.1} parent=5 // pred_region
      %s249 = ssub.s32 %s15, 1
      // Predicated region
      $region13: #{dqn_linear_forward.1} parent=11 // pred_check
        %p250 = pneg %p62
      $region14: #{dqn_linear_forward.1} parent=11 // pred_check_branch
        %252 = sbr.rel (%p250) target = $region16
      $region15: #{dqn_linear_forward.1} parent=11 // pred_region
        _
      $region16: #{dqn_linear_forward.1} parent=11 // pred_fallthru
        _
      // Predicated region
      $region17: #{dqn_linear_forward.1} parent=11 // pred_check
        %p253 = pneg %p83
      $region18: #{dqn_linear_forward.1} parent=11 // pred_check_branch
        %255 = sbr.rel (%p253) target = $region20
      $region19: #{dqn_linear_forward.1} parent=11 // pred_region
        _
      $region20: #{dqn_linear_forward.1} parent=11 // pred_fallthru
        _
      // Predicated region
      $region21: #{dqn_linear_forward.1} parent=11 // pred_check
        %p256 = pneg %p104
      $region22: #{dqn_linear_forward.1} parent=11 // pred_check_branch
        %258 = sbr.rel (%p256) target = $region24
      $region23: #{dqn_linear_forward.1} parent=11 // pred_region
        _
      $region24: #{dqn_linear_forward.1} parent=11 // pred_fallthru
        _
      // Predicated region
      $region25: #{dqn_linear_forward.1} parent=11 // pred_check
        %p259 = pneg %p125
      $region26: #{dqn_linear_forward.1} parent=11 // pred_check_branch
        %261 = sbr.rel (%p259) target = $region28
      $region27: #{dqn_linear_forward.1} parent=11 // pred_region
        _
      $region28: #{dqn_linear_forward.1} parent=11 // pred_fallthru
        _
      // Predicated region
      $region29: #{dqn_linear_forward.1} parent=11 // pred_check
        %p262 = pneg %p146
      $region30: #{dqn_linear_forward.1} parent=11 // pred_check_branch
        %264 = sbr.rel (%p262) target = $region32
      $region31: #{dqn_linear_forward.1} parent=11 // pred_region
        _
      $region32: #{dqn_linear_forward.1} parent=11 // pred_fallthru
        _
      // Predicated region
      $region33: #{dqn_linear_forward.1} parent=11 // pred_check
        %p265 = pneg %p167
      $region34: #{dqn_linear_forward.1} parent=11 // pred_check_branch
        %267 = sbr.rel (%p265) target = $region36
      $region35: #{dqn_linear_forward.1} parent=11 // pred_region
        _
      $region36: #{dqn_linear_forward.1} parent=11 // pred_fallthru
        _
      // Predicated region
      $region37: #{dqn_linear_forward.1} parent=11 // pred_check
        %p268 = pneg %p188
      $region38: #{dqn_linear_forward.1} parent=11 // pred_check_branch
        %270 = sbr.rel (%p268) target = $region40
      $region39: #{dqn_linear_forward.1} parent=11 // pred_region
        _
      $region40: #{dqn_linear_forward.1} parent=11 // pred_fallthru
        _
      // Predicated region
      $region41: #{dqn_linear_forward.1} parent=11 // pred_check
        %p271 = pneg %p209
      $region42: #{dqn_linear_forward.1} parent=11 // pred_check_branch
        %273 = sbr.rel (%p271) target = $region44
      $region43: #{dqn_linear_forward.1} parent=11 // pred_region
        _
      $region44: #{dqn_linear_forward.1} parent=11 // pred_fallthru
        _
    $region12: #{dqn_linear_forward.1} parent=5 // pred_fallthru
      _
    %p274 = scmp.lt.s32.totalorder %s15, 2
    // Predicated region
    $region45: #{dqn_linear_forward.1} parent=5 // pred_check
      %p275 = pneg %p274
    $region46: #{dqn_linear_forward.1} parent=5 // pred_check_branch
      %277 = sbr.rel (%p275) target = $region48
    $region47: #{dqn_linear_forward.1} parent=5 // pred_region
      // Predicated region
      $region49: #{dqn_linear_forward.1} parent=47 // pred_check
        %p278 = pneg %p35
      $region50: #{dqn_linear_forward.1} parent=47 // pred_check_branch
        %280 = sbr.rel (%p278) target = $region52
      $region51: #{dqn_linear_forward.1} parent=47 // pred_region
        %s281 = smul.u32 4, %s15
        %p282 = scmp.lt.s32.totalorder %s281, 7
        %s283 = scalar_select %p282, %s281, 7
        %s284 = smul.addr %s283, 4
        %s285 = scalar_lea.vmem %s0, %s284
        %s286 = smul.u32 4, %s15
      $region52: #{dqn_linear_forward.1} parent=47 // pred_fallthru
        _
    $region48: #{dqn_linear_forward.1} parent=5 // pred_fallthru
      _
    %p287 = scmp.le.s32.totalorder 1, %s15
    %p288 = scmp.lt.s32.totalorder %s15, 3
    %p289 = pnand %p287, %p288
    %p290 = pneg %p289
    // Predicated region
    $region53: #{dqn_linear_forward.1} parent=5 // pred_check
      _
    $region54: #{dqn_linear_forward.1} parent=5 // pred_check_branch
      %292 = sbr.rel (%p289) target = $region56
    $region55: #{dqn_linear_forward.1} parent=5 // pred_region
      %s293 = ssub.s32 %s15, 1
      %s294 = smul.u32 4, %s20
      %p295 = scmp.lt.s32.totalorder %s294, 7
      %s296 = scalar_select %p295, %s294, 7
      %s297 = smul.addr %s296, 4
      %s298 = scalar_lea.vmem %s0, %s297
      %p299 = pneg %p41
      %p300 = pneg %p38
      %p301 = pneg %p62
      %p302 = pneg %p59
      %p303 = pneg %p83
      %p304 = pneg %p80
      %p305 = pneg %p104
      %p306 = pneg %p101
      %p307 = pneg %p125
      %p308 = pneg %p122
      %p309 = pneg %p146
      %p310 = pneg %p143
      %p311 = pneg %p167
      %p312 = pneg %p164
      %p313 = pneg %p188
      %p314 = pneg %p185
      %p315 = pneg %p209
      %p316 = pneg %p206
      %p317 = pneg %p235
      %p318 = pneg %p232
      %s319 = smul.u32 4, %s20
      %p320 = scmp.lt.s32.totalorder %s319, 7
      %s321 = scalar_select %p320, %s319, 7
      %s322 = smul.addr %s321, 8
      %s323 = scalar_lea.vmem %s9, %s322
      %s324 = smul.u32 4, %s20
      %p325 = scmp.lt.s32.totalorder %s324, 7
      %s326 = scalar_select %p325, %s324, 7
      %s327 = smul.addr %s326, 4
      %s328 = scalar_lea.vmem %s0, %s327
      %s329 = smul.u32 4, %s20
      %s330 = smul.u32 4, %s20
      %p331 = scmp.lt.s32.totalorder %s330, 7
      %s332 = scalar_select %p331, %s330, 7
      %s333 = smul.addr %s332, 8
      %s334 = scalar_lea.vmem %s9, %s333
      %s335 = smul.u32 4, %s20
      %v337 = vld [vmem:[%s328] sm:$0xf]
      %v338 = vld [vmem:[%s328 + $0x4] sm:$0xf]
      %v339 = vld [vmem:[%s328 + $0x8] sm:$0xf]
      %v340 = vld [vmem:[%s328 + $0xc] sm:$0xf]
      %v341 = vld [vmem:[%s1] sm:$0xff]
      %v342 = vld [vmem:[%s1 + $0x8] sm:$0xff]
      %v343 = vld [vmem:[%s1 + $0x10] sm:$0xff]
      %v344 = vld [vmem:[%s1 + $0x18] sm:$0xff]
      %v345 = vld [vmem:[%s1 + $0x20] sm:$0xff]
      %v346 = vld [vmem:[%s1 + $0x28] sm:$0xff]
      %v347 = vld [vmem:[%s1 + $0x30] sm:$0xff]
      %v348 = vld [vmem:[%s1 + $0x38] sm:$0xff]
      %v349 = vld [vmem:[%s1 + $0x40] sm:$0xff]
      %v350 = vld [vmem:[%s1 + $0x48] sm:$0xff]
      %v351 = vld [vmem:[%s1 + $0x50] sm:$0xff]
      %v352 = vld [vmem:[%s1 + $0x58] sm:$0xff]
      %v353 = vld [vmem:[%s1 + $0x60] sm:$0xff]
      %v354 = vld [vmem:[%s1 + $0x68] sm:$0xff]
      %v355 = vld [vmem:[%s1 + $0x70] sm:$0xff]
      %v356 = vld [vmem:[%s1 + $0x78] sm:$0xff]
      %v357 = vld [vmem:[%s2] sm:$0x3]
      %v359 = vlaneseq
      %v360 = vshrl.u32 %v359, 7
      %v361 = vsub.s32 0, %v360
      %v362 = vrot.slane %v357, %v361
      %v363 = vlaneseq
      %v364 = vshrl.u32 %v363, 7
      %v365 = vsub.s32 1, %v364
      %v366 = vrot.slane %v357, %v365
      %v373 = vunpack.c.l.b16 %v337
      %v374 = vunpack.c.l.b16 %v338
      %v375 = vunpack.c.l.b16 %v339
      %v376 = vunpack.c.l.b16 %v340
      %v377 = vpack.c.b16 %v374, %v373
      %v378 = vpack.c.b16 %v376, %v375
      %v397 = vunpack.c.l.b16 %v341
      %v398 = vunpack.c.h.b16 %v341
      %v399 = vunpack.c.l.b16 %v342
      %v400 = vunpack.c.h.b16 %v342
      %v401 = vunpack.c.l.b16 %v343
      %v402 = vunpack.c.h.b16 %v343
      %v403 = vunpack.c.l.b16 %v344
      %v404 = vunpack.c.h.b16 %v344
      %v405 = vunpack.c.l.b16 %v345
      %v406 = vunpack.c.h.b16 %v345
      %v407 = vunpack.c.l.b16 %v346
      %v408 = vunpack.c.h.b16 %v346
      %v409 = vunpack.c.l.b16 %v347
      %v410 = vunpack.c.h.b16 %v347
      %v411 = vunpack.c.l.b16 %v348
      %v412 = vunpack.c.h.b16 %v348
      %v413 = vunpack.c.l.b16 %v349
      %v414 = vunpack.c.h.b16 %v349
      %v415 = vunpack.c.l.b16 %v350
      %v416 = vunpack.c.h.b16 %v350
      %v417 = vunpack.c.l.b16 %v351
      %v418 = vunpack.c.h.b16 %v351
      %v419 = vunpack.c.l.b16 %v352
      %v420 = vunpack.c.h.b16 %v352
      %v421 = vunpack.c.l.b16 %v353
      %v422 = vunpack.c.h.b16 %v353
      %v423 = vunpack.c.l.b16 %v354
      %v424 = vunpack.c.h.b16 %v354
      %v425 = vunpack.c.l.b16 %v355
      %v426 = vunpack.c.h.b16 %v355
      %v427 = vunpack.c.l.b16 %v356
      %v428 = vunpack.c.h.b16 %v356
      %v429 = vpack.c.b16 %v399, %v397
      %v430 = vpack.c.b16 %v400, %v398
      %v431 = vpack.c.b16 %v403, %v401
      %v432 = vpack.c.b16 %v404, %v402
      %v433 = vpack.c.b16 %v407, %v405
      %v434 = vpack.c.b16 %v408, %v406
      %v435 = vpack.c.b16 %v411, %v409
      %v436 = vpack.c.b16 %v412, %v410
      %v437 = vpack.c.b16 %v415, %v413
      %v438 = vpack.c.b16 %v416, %v414
      %v439 = vpack.c.b16 %v419, %v417
      %v440 = vpack.c.b16 %v420, %v418
      %v441 = vpack.c.b16 %v423, %v421
      %v442 = vpack.c.b16 %v424, %v422
      %v443 = vpack.c.b16 %v427, %v425
      %v444 = vpack.c.b16 %v428, %v426
      %461 = vmatprep.subr.bf16.mxu0 %v430
      %462 = vmatpush1.bf16.msra.mxu0 %v429
      %463 = vmatprep.subr.bf16.mxu0 %v432
      %464 = vmatpush1.bf16.msra.mxu0 %v431
      %465 = vmatprep.subr.bf16.mxu0 %v434
      %466 = vmatpush1.bf16.msra.mxu0 %v433
      %467 = vmatprep.subr.bf16.mxu0 %v436
      %468 = vmatpush1.bf16.msra.mxu0 %v435
      %469 = vmatprep.subr.bf16.mxu0 %v438
      %470 = vmatpush1.bf16.msra.mxu0 %v437
      %471 = vmatprep.subr.bf16.mxu0 %v440
      %472 = vmatpush1.bf16.msra.mxu0 %v439
      %473 = vmatprep.subr.bf16.mxu0 %v442
      %474 = vmatpush1.bf16.msra.mxu0 %v441
      %475 = vmatprep.subr.bf16.mxu0 %v444
      %476 = vmatpush1.bf16.msra.mxu0 %v443
      %477 = vmatprep.subr.bf16.mxu0 0
      %478 = vmatpush1.bf16.msra.mxu0 0
      %479 = vmatprep.subr.bf16.mxu0 0
      %480 = vmatpush1.bf16.msra.mxu0 0
      %481 = vmatprep.subr.bf16.mxu0 0
      %482 = vmatpush1.bf16.msra.mxu0 0
      %483 = vmatprep.subr.bf16.mxu0 0
      %484 = vmatpush1.bf16.msra.mxu0 0
      %485 = vmatprep.subr.bf16.mxu0 0
      %486 = vmatpush1.bf16.msra.mxu0 0
      %487 = vmatprep.subr.bf16.mxu0 0
      %488 = vmatpush1.bf16.msra.mxu0 0
      %489 = vmatprep.subr.bf16.mxu0 0
      %490 = vmatpush1.bf16.msra.mxu0 0
      %491 = vmatprep.subr.bf16.mxu0 0
      %492 = vmatpush1.bf16.msra.mxu0 0
      %493 = vmatprep.mubr.bf16.mxu0 0
      %494 = vmatmul.mubr.bf16.gmra.mrb[0].mxu0 %v377
      %v495 = vpop.f32.mrb[0].mxu0
      %v496 = vadd.f32 %v362, %v495
      %v497 = vpop.f32.mrb[0].mxu0
      %v498 = vadd.f32 %v366, %v497
      %v499 = vpop.f32.mrb[0].mxu0
      %v500 = vadd.f32 %v362, %v499
      %v501 = vpop.f32.mrb[0].mxu0
      %v502 = vadd.f32 %v366, %v501
      %503 = vmatprep.mubr.bf16.mxu0 0
      %504 = vmatmul.mubr.bf16.gmra.mrb[0].mxu0 %v378
      %v505 = vpop.f32.mrb[0].mxu0
      %v506 = vadd.f32 %v362, %v505
      %v507 = vpop.f32.mrb[0].mxu0
      %v508 = vadd.f32 %v366, %v507
      %v509 = vpop.f32.mrb[0].mxu0
      %v510 = vadd.f32 %v362, %v509
      %v511 = vpop.f32.mrb[0].mxu0
      %v512 = vadd.f32 %v366, %v511
      %513 = vdwg.mxu0
      %v514 = vmax.f32 %v496, 0.0
      %v515 = vmax.f32 %v498, 0.0
      %v516 = vmax.f32 %v500, 0.0
      %v517 = vmax.f32 %v502, 0.0
      %v518 = vmax.f32 %v506, 0.0
      %v519 = vmax.f32 %v508, 0.0
      %v520 = vmax.f32 %v510, 0.0
      %v521 = vmax.f32 %v512, 0.0
      %v522 = vpack.c.bf16 %v516, %v514
      %v523 = vpack.c.bf16 %v517, %v515
      %v524 = vpack.c.bf16 %v520, %v518
      %v525 = vpack.c.bf16 %v521, %v519
      %v526 = vld [vmem:[%s3] sm:$0xf]
      %v527 = vld [vmem:[%s3 + $0x4] sm:$0xf]
      %v528 = vld [vmem:[%s3 + $0x8] sm:$0xf]
      %v529 = vld [vmem:[%s3 + $0xc] sm:$0xf]
      %v530 = vld [vmem:[%s3 + $0x10] sm:$0xf]
      %v531 = vld [vmem:[%s3 + $0x14] sm:$0xf]
      %v532 = vld [vmem:[%s3 + $0x18] sm:$0xf]
      %v533 = vld [vmem:[%s3 + $0x1c] sm:$0xf]
      %v534 = vld [vmem:[%s3 + $0x20] sm:$0xf]
      %v535 = vld [vmem:[%s3 + $0x24] sm:$0xf]
      %v536 = vld [vmem:[%s3 + $0x28] sm:$0xf]
      %v537 = vld [vmem:[%s3 + $0x2c] sm:$0xf]
      %v538 = vld [vmem:[%s3 + $0x30] sm:$0xf]
      %v539 = vld [vmem:[%s3 + $0x34] sm:$0xf]
      %v540 = vld [vmem:[%s3 + $0x38] sm:$0xf]
      %v541 = vld [vmem:[%s3 + $0x3c] sm:$0xf]
      %v542 = vld [vmem:[%s3 + $0x40] sm:$0xf]
      %v543 = vld [vmem:[%s3 + $0x44] sm:$0xf]
      %v544 = vld [vmem:[%s3 + $0x48] sm:$0xf]
      %v545 = vld [vmem:[%s3 + $0x4c] sm:$0xf]
      %v546 = vld [vmem:[%s3 + $0x50] sm:$0xf]
      %v547 = vld [vmem:[%s3 + $0x54] sm:$0xf]
      %v548 = vld [vmem:[%s3 + $0x58] sm:$0xf]
      %v549 = vld [vmem:[%s3 + $0x5c] sm:$0xf]
      %v550 = vld [vmem:[%s3 + $0x60] sm:$0xf]
      %v551 = vld [vmem:[%s3 + $0x64] sm:$0xf]
      %v552 = vld [vmem:[%s3 + $0x68] sm:$0xf]
      %v553 = vld [vmem:[%s3 + $0x6c] sm:$0xf]
      %v554 = vld [vmem:[%s3 + $0x70] sm:$0xf]
      %v555 = vld [vmem:[%s3 + $0x74] sm:$0xf]
      %v556 = vld [vmem:[%s3 + $0x78] sm:$0xf]
      %v557 = vld [vmem:[%s3 + $0x7c] sm:$0xf]
      %v558 = vld [vmem:[%s4] sm:$0x1]
      %v560 = vlaneseq
      %v561 = vshrl.u32 %v560, 7
      %v562 = vsub.s32 0, %v561
      %v563 = vrot.slane %v558, %v562
      %v597 = vunpack.c.l.b16 %v526
      %v598 = vunpack.c.l.b16 %v527
      %v599 = vunpack.c.l.b16 %v528
      %v600 = vunpack.c.l.b16 %v529
      %v601 = vunpack.c.l.b16 %v530
      %v602 = vunpack.c.l.b16 %v531
      %v603 = vunpack.c.l.b16 %v532
      %v604 = vunpack.c.l.b16 %v533
      %v605 = vunpack.c.l.b16 %v534
      %v606 = vunpack.c.l.b16 %v535
      %v607 = vunpack.c.l.b16 %v536
      %v608 = vunpack.c.l.b16 %v537
      %v609 = vunpack.c.l.b16 %v538
      %v610 = vunpack.c.l.b16 %v539
      %v611 = vunpack.c.l.b16 %v540
      %v612 = vunpack.c.l.b16 %v541
      %v613 = vunpack.c.l.b16 %v542
      %v614 = vunpack.c.l.b16 %v543
      %v615 = vunpack.c.l.b16 %v544
      %v616 = vunpack.c.l.b16 %v545
      %v617 = vunpack.c.l.b16 %v546
      %v618 = vunpack.c.l.b16 %v547
      %v619 = vunpack.c.l.b16 %v548
      %v620 = vunpack.c.l.b16 %v549
      %v621 = vunpack.c.l.b16 %v550
      %v622 = vunpack.c.l.b16 %v551
      %v623 = vunpack.c.l.b16 %v552
      %v624 = vunpack.c.l.b16 %v553
      %v625 = vunpack.c.l.b16 %v554
      %v626 = vunpack.c.l.b16 %v555
      %v627 = vunpack.c.l.b16 %v556
      %v628 = vunpack.c.l.b16 %v557
      %v629 = vpack.c.b16 %v598, %v597
      %v630 = vpack.c.b16 %v600, %v599
      %v631 = vpack.c.b16 %v602, %v601
      %v632 = vpack.c.b16 %v604, %v603
      %v633 = vpack.c.b16 %v606, %v605
      %v634 = vpack.c.b16 %v608, %v607
      %v635 = vpack.c.b16 %v610, %v609
      %v636 = vpack.c.b16 %v612, %v611
      %v637 = vpack.c.b16 %v614, %v613
      %v638 = vpack.c.b16 %v616, %v615
      %v639 = vpack.c.b16 %v618, %v617
      %v640 = vpack.c.b16 %v620, %v619
      %v641 = vpack.c.b16 %v622, %v621
      %v642 = vpack.c.b16 %v624, %v623
      %v643 = vpack.c.b16 %v626, %v625
      %v644 = vpack.c.b16 %v628, %v627
      %661 = vmatprep.subr.bf16.mxu0 0
      %662 = vmatpush1.bf16.msra.mxu0 %v629
      %663 = vmatprep.subr.bf16.mxu0 0
      %664 = vmatpush1.bf16.msra.mxu0 %v630
      %665 = vmatprep.subr.bf16.mxu0 0
      %666 = vmatpush1.bf16.msra.mxu0 %v631
      %667 = vmatprep.subr.bf16.mxu0 0
      %668 = vmatpush1.bf16.msra.mxu0 %v632
      %669 = vmatprep.subr.bf16.mxu0 0
      %670 = vmatpush1.bf16.msra.mxu0 %v633
      %671 = vmatprep.subr.bf16.mxu0 0
      %672 = vmatpush1.bf16.msra.mxu0 %v634
      %673 = vmatprep.subr.bf16.mxu0 0
      %674 = vmatpush1.bf16.msra.mxu0 %v635
      %675 = vmatprep.subr.bf16.mxu0 0
      %676 = vmatpush1.bf16.msra.mxu0 %v636
      %677 = vmatprep.subr.bf16.mxu0 0
      %678 = vmatpush1.bf16.msra.mxu0 %v637
      %679 = vmatprep.subr.bf16.mxu0 0
      %680 = vmatpush1.bf16.msra.mxu0 %v638
      %681 = vmatprep.subr.bf16.mxu0 0
      %682 = vmatpush1.bf16.msra.mxu0 %v639
      %683 = vmatprep.subr.bf16.mxu0 0
      %684 = vmatpush1.bf16.msra.mxu0 %v640
      %685 = vmatprep.subr.bf16.mxu0 0
      %686 = vmatpush1.bf16.msra.mxu0 %v641
      %687 = vmatprep.subr.bf16.mxu0 0
      %688 = vmatpush1.bf16.msra.mxu0 %v642
      %689 = vmatprep.subr.bf16.mxu0 0
      %690 = vmatpush1.bf16.msra.mxu0 %v643
      %691 = vmatprep.subr.bf16.mxu0 0
      %692 = vmatpush1.bf16.msra.mxu0 %v644
      %693 = vmatprep.mubr.bf16.mxu0 %v523
      %694 = vmatmul.mubr.bf16.gmra.mrb[0].mxu0 %v522
      %v695 = vpop.f32.mrb[0].mxu0
      %v696 = vadd.f32 %v563, %v695
      %v697 = vpop.f32.mrb[0].mxu0
      %v698 = vpop.f32.mrb[0].mxu0
      %v699 = vadd.f32 %v563, %v698
      %v700 = vpop.f32.mrb[0].mxu0
      %701 = vmatprep.mubr.bf16.mxu0 %v525
      %702 = vmatmul.mubr.bf16.gmra.mrb[0].mxu0 %v524
      %v703 = vpop.f32.mrb[0].mxu0
      %v704 = vadd.f32 %v563, %v703
      %v705 = vpop.f32.mrb[0].mxu0
      %v706 = vpop.f32.mrb[0].mxu0
      %v707 = vadd.f32 %v563, %v706
      %v708 = vpop.f32.mrb[0].mxu0
      %709 = vdwg.mxu0
      %v710 = vmax.f32 %v696, 0.0
      %v711 = vmax.f32 %v699, 0.0
      %v712 = vmax.f32 %v704, 0.0
      %v713 = vmax.f32 %v707, 0.0
      %v714 = vpack.c.bf16 %v711, %v710
      %v715 = vpack.c.bf16 %v713, %v712
      %v716 = vld [vmem:[%s5] sm:$0xf]
      %v717 = vld [vmem:[%s5 + $0x4] sm:$0xf]
      %v718 = vld [vmem:[%s5 + $0x8] sm:$0xf]
      %v719 = vld [vmem:[%s5 + $0xc] sm:$0xf]
      %v720 = vld [vmem:[%s5 + $0x10] sm:$0xf]
      %v721 = vld [vmem:[%s5 + $0x14] sm:$0xf]
      %v722 = vld [vmem:[%s5 + $0x18] sm:$0xf]
      %v723 = vld [vmem:[%s5 + $0x1c] sm:$0xf]
      %v724 = vld [vmem:[%s5 + $0x20] sm:$0xf]
      %v725 = vld [vmem:[%s5 + $0x24] sm:$0xf]
      %v726 = vld [vmem:[%s5 + $0x28] sm:$0xf]
      %v727 = vld [vmem:[%s5 + $0x2c] sm:$0xf]
      %v728 = vld [vmem:[%s5 + $0x30] sm:$0xf]
      %v729 = vld [vmem:[%s5 + $0x34] sm:$0xf]
      %v730 = vld [vmem:[%s5 + $0x38] sm:$0xf]
      %v731 = vld [vmem:[%s5 + $0x3c] sm:$0xf]
      %v732 = vld [vmem:[%s6] sm:$0x1]
      %v734 = vlaneseq
      %v735 = vshrl.u32 %v734, 7
      %v736 = vsub.s32 0, %v735
      %v737 = vrot.slane %v732, %v736
      %v755 = vunpack.c.l.b16 %v716
      %v756 = vunpack.c.l.b16 %v717
      %v757 = vunpack.c.l.b16 %v718
      %v758 = vunpack.c.l.b16 %v719
      %v759 = vunpack.c.l.b16 %v720
      %v760 = vunpack.c.l.b16 %v721
      %v761 = vunpack.c.l.b16 %v722
      %v762 = vunpack.c.l.b16 %v723
      %v763 = vunpack.c.l.b16 %v724
      %v764 = vunpack.c.l.b16 %v725
      %v765 = vunpack.c.l.b16 %v726
      %v766 = vunpack.c.l.b16 %v727
      %v767 = vunpack.c.l.b16 %v728
      %v768 = vunpack.c.l.b16 %v729
      %v769 = vunpack.c.l.b16 %v730
      %v770 = vunpack.c.l.b16 %v731
      %v771 = vpack.c.b16 %v756, %v755
      %v772 = vpack.c.b16 %v758, %v757
      %v773 = vpack.c.b16 %v760, %v759
      %v774 = vpack.c.b16 %v762, %v761
      %v775 = vpack.c.b16 %v764, %v763
      %v776 = vpack.c.b16 %v766, %v765
      %v777 = vpack.c.b16 %v768, %v767
      %v778 = vpack.c.b16 %v770, %v769
      %787 = vmatprep.subr.bf16.mxu0 0
      %788 = vmatpush1.bf16.msra.mxu0 %v771
      %789 = vmatprep.subr.bf16.mxu0 0
      %790 = vmatpush1.bf16.msra.mxu0 %v772
      %791 = vmatprep.subr.bf16.mxu0 0
      %792 = vmatpush1.bf16.msra.mxu0 %v773
      %793 = vmatprep.subr.bf16.mxu0 0
      %794 = vmatpush1.bf16.msra.mxu0 %v774
      %795 = vmatprep.subr.bf16.mxu0 0
      %796 = vmatpush1.bf16.msra.mxu0 %v775
      %797 = vmatprep.subr.bf16.mxu0 0
      %798 = vmatpush1.bf16.msra.mxu0 %v776
      %799 = vmatprep.subr.bf16.mxu0 0
      %800 = vmatpush1.bf16.msra.mxu0 %v777
      %801 = vmatprep.subr.bf16.mxu0 0
      %802 = vmatpush1.bf16.msra.mxu0 %v778
      %803 = vmatprep.subr.bf16.mxu0 0
      %804 = vmatpush1.bf16.msra.mxu0 0
      %805 = vmatprep.subr.bf16.mxu0 0
      %806 = vmatpush1.bf16.msra.mxu0 0
      %807 = vmatprep.subr.bf16.mxu0 0
      %808 = vmatpush1.bf16.msra.mxu0 0
      %809 = vmatprep.subr.bf16.mxu0 0
      %810 = vmatpush1.bf16.msra.mxu0 0
      %811 = vmatprep.subr.bf16.mxu0 0
      %812 = vmatpush1.bf16.msra.mxu0 0
      %813 = vmatprep.subr.bf16.mxu0 0
      %814 = vmatpush1.bf16.msra.mxu0 0
      %815 = vmatprep.subr.bf16.mxu0 0
      %816 = vmatpush1.bf16.msra.mxu0 0
      %817 = vmatprep.subr.bf16.mxu0 0
      %818 = vmatpush1.bf16.msra.mxu0 0
      %819 = vmatprep.mubr.bf16.mxu0 0
      %820 = vmatmul.mubr.bf16.gmra.mrb[0].mxu0 %v714
      %v821 = vpop.f32.mrb[0].mxu0
      %v822 = vadd.f32 %v737, %v821
      %v823 = vpop.f32.mrb[0].mxu0
      %v824 = vpop.f32.mrb[0].mxu0
      %v825 = vadd.f32 %v737, %v824
      %v826 = vpop.f32.mrb[0].mxu0
      %827 = vmatprep.mubr.bf16.mxu0 0
      %828 = vmatmul.mubr.bf16.gmra.mrb[0].mxu0 %v715
      %v829 = vpop.f32.mrb[0].mxu0
      %v830 = vadd.f32 %v737, %v829
      %v831 = vpop.f32.mrb[0].mxu0
      %v832 = vpop.f32.mrb[0].mxu0
      %v833 = vadd.f32 %v737, %v832
      %v834 = vpop.f32.mrb[0].mxu0
      %835 = vdwg.mxu0
      %v836 = vmax.f32 %v822, 0.0
      %v837 = vmax.f32 %v825, 0.0
      %v838 = vmax.f32 %v830, 0.0
      %v839 = vmax.f32 %v833, 0.0
      %v840 = vpack.c.bf16 %v837, %v836
      %v841 = vpack.c.bf16 %v839, %v838
      %v842 = vld [vmem:[%s7] sm:$0xf]
      %v843 = vld [vmem:[%s7 + $0x4] sm:$0xf]
      %v844 = vld [vmem:[%s7 + $0x8] sm:$0xf]
      %v845 = vld [vmem:[%s7 + $0xc] sm:$0xf]
      %v846 = vld [vmem:[%s7 + $0x10] sm:$0xf]
      %v847 = vld [vmem:[%s7 + $0x14] sm:$0xf]
      %v848 = vld [vmem:[%s7 + $0x18] sm:$0xf]
      %v849 = vld [vmem:[%s7 + $0x1c] sm:$0xf]
      %v850 = vld [vmem:[%s7 + $0x20] sm:$0xf]
      %v851 = vld [vmem:[%s7 + $0x24] sm:$0xf]
      %v852 = vld [vmem:[%s7 + $0x28] sm:$0xf]
      %v853 = vld [vmem:[%s7 + $0x2c] sm:$0xf]
      %v854 = vld [vmem:[%s7 + $0x30] sm:$0xf]
      %v855 = vld [vmem:[%s7 + $0x34] sm:$0xf]
      %v856 = vld [vmem:[%s7 + $0x38] sm:$0xf]
      %v857 = vld [vmem:[%s7 + $0x3c] sm:$0xf]
      %v858 = vld [vmem:[%s8] sm:$0x1]
      %v860 = vlaneseq
      %v861 = vshrl.u32 %v860, 7
      %v862 = vsub.s32 0, %v861
      %v863 = vrot.slane %v858, %v862
      %v881 = vunpack.c.l.b16 %v842
      %v882 = vunpack.c.l.b16 %v843
      %v883 = vunpack.c.l.b16 %v844
      %v884 = vunpack.c.l.b16 %v845
      %v885 = vunpack.c.l.b16 %v846
      %v886 = vunpack.c.l.b16 %v847
      %v887 = vunpack.c.l.b16 %v848
      %v888 = vunpack.c.l.b16 %v849
      %v889 = vunpack.c.l.b16 %v850
      %v890 = vunpack.c.l.b16 %v851
      %v891 = vunpack.c.l.b16 %v852
      %v892 = vunpack.c.l.b16 %v853
      %v893 = vunpack.c.l.b16 %v854
      %v894 = vunpack.c.l.b16 %v855
      %v895 = vunpack.c.l.b16 %v856
      %v896 = vunpack.c.l.b16 %v857
      %v897 = vpack.c.b16 %v882, %v881
      %v898 = vpack.c.b16 %v884, %v883
      %v899 = vpack.c.b16 %v886, %v885
      %v900 = vpack.c.b16 %v888, %v887
      %v901 = vpack.c.b16 %v890, %v889
      %v902 = vpack.c.b16 %v892, %v891
      %v903 = vpack.c.b16 %v894, %v893
      %v904 = vpack.c.b16 %v896, %v895
      %913 = vmatprep.subr.bf16.mxu0 0
      %914 = vmatpush1.bf16.msra.mxu0 %v897
      %915 = vmatprep.subr.bf16.mxu0 0
      %916 = vmatpush1.bf16.msra.mxu0 %v898
      %917 = vmatprep.subr.bf16.mxu0 0
      %918 = vmatpush1.bf16.msra.mxu0 %v899
      %919 = vmatprep.subr.bf16.mxu0 0
      %920 = vmatpush1.bf16.msra.mxu0 %v900
      %921 = vmatprep.subr.bf16.mxu0 0
      %922 = vmatpush1.bf16.msra.mxu0 %v901
      %923 = vmatprep.subr.bf16.mxu0 0
      %924 = vmatpush1.bf16.msra.mxu0 %v902
      %925 = vmatprep.subr.bf16.mxu0 0
      %926 = vmatpush1.bf16.msra.mxu0 %v903
      %927 = vmatprep.subr.bf16.mxu0 0
      %928 = vmatpush1.bf16.msra.mxu0 %v904
      %929 = vmatprep.subr.bf16.mxu0 0
      %930 = vmatpush1.bf16.msra.mxu0 0
      %931 = vmatprep.subr.bf16.mxu0 0
      %932 = vmatpush1.bf16.msra.mxu0 0
      %933 = vmatprep.subr.bf16.mxu0 0
      %934 = vmatpush1.bf16.msra.mxu0 0
      %935 = vmatprep.subr.bf16.mxu0 0
      %936 = vmatpush1.bf16.msra.mxu0 0
      %937 = vmatprep.subr.bf16.mxu0 0
      %938 = vmatpush1.bf16.msra.mxu0 0
      %939 = vmatprep.subr.bf16.mxu0 0
      %940 = vmatpush1.bf16.msra.mxu0 0
      %941 = vmatprep.subr.bf16.mxu0 0
      %942 = vmatpush1.bf16.msra.mxu0 0
      %943 = vmatprep.subr.bf16.mxu0 0
      %944 = vmatpush1.bf16.msra.mxu0 0
      %945 = vmatprep.mubr.bf16.mxu0 0
      %946 = vmatmul.mubr.bf16.gmra.mrb[0].mxu0 %v840
      %v947 = vpop.f32.mrb[0].mxu0
      %v948 = vadd.f32 %v863, %v947
      %v949 = vpop.f32.mrb[0].mxu0
      %v950 = vpop.f32.mrb[0].mxu0
      %v951 = vadd.f32 %v863, %v950
      %v952 = vpop.f32.mrb[0].mxu0
      %953 = vmatprep.mubr.bf16.mxu0 0
      %954 = vmatmul.mubr.bf16.gmra.mrb[0].mxu0 %v841
      %v955 = vpop.f32.mrb[0].mxu0
      %v956 = vadd.f32 %v863, %v955
      %v957 = vpop.f32.mrb[0].mxu0
      %v958 = vpop.f32.mrb[0].mxu0
      %v959 = vadd.f32 %v863, %v958
      %v960 = vpop.f32.mrb[0].mxu0
      %961 = vdwg.mxu0
      %962 = vst [vmem:[%s334] sm:$0xff] %v948
      %963 = vst [vmem:[%s334 + $0x8] sm:$0xff] %v951
      %964 = vst [vmem:[%s334 + $0x10] sm:$0xff] %v956
      %965 = vst [vmem:[%s334 + $0x18] sm:$0xff] %v959
      %s966 = smul.u32 4, %s20
      %p967 = scmp.lt.s32.totalorder %s966, 7
      %s968 = scalar_select %p967, %s966, 7
      %s969 = smul.addr %s968, 8
      %s970 = scalar_lea.vmem %s9, %s969
      // Predicated region
      $region57: #{dqn_linear_forward.1} parent=55 // pred_check
        %p971 = pneg %p232
      $region58: #{dqn_linear_forward.1} parent=55 // pred_check_branch
        %973 = sbr.rel (%p971) target = $region60
      $region59: #{dqn_linear_forward.1} parent=55 // pred_region
        %s974 = smul.u32 4, %s20
      $region60: #{dqn_linear_forward.1} parent=55 // pred_fallthru
        _
    $region56: #{dqn_linear_forward.1} parent=5 // pred_fallthru
      _
    %p975 = scmp.le.s32.totalorder 2, %s15
    // Predicated region
    $region61: #{dqn_linear_forward.1} parent=5 // pred_check
      %p976 = pneg %p975
    $region62: #{dqn_linear_forward.1} parent=5 // pred_check_branch
      %978 = sbr.rel (%p976) target = $region64
    $region63: #{dqn_linear_forward.1} parent=5 // pred_region
      %s979 = ssub.s32 %s15, 2
      // Predicated region
      $region65: #{dqn_linear_forward.1} parent=63 // pred_check
        %p980 = pneg %p238
      $region66: #{dqn_linear_forward.1} parent=63 // pred_check_branch
        %982 = sbr.rel (%p980) target = $region68
      $region67: #{dqn_linear_forward.1} parent=63 // pred_region
        %s983 = smul.u32 4, %s21
        %p984 = scmp.lt.s32.totalorder %s983, 7
        %s985 = scalar_select %p984, %s983, 7
        %s986 = smul.addr %s985, 8
        %s987 = scalar_lea.vmem %s9, %s986
      $region68: #{dqn_linear_forward.1} parent=63 // pred_fallthru
        _
    $region64: #{dqn_linear_forward.1} parent=5 // pred_fallthru
      _
  $region6: #{dqn_linear_forward.1} parent=0 // loop_footer
    %s19 = sadd.s32 1, %s15
  $region7: #{dqn_linear_forward.1} parent=0 // loop_footer_branch
    %14 = sbr.rel target = $region3
  $region8: #{dqn_linear_forward.1} parent=0 // loop_exit
    _

</llo_original>
